<compile_context>
chip_gen: v6e
topology: v6e:2x2x1
jax: 0.10.0
libtpu: 0.0.40
codegen_flags: <defaults>
</compile_context>

<pallas_src>
import jax
import jax.numpy as jnp
from jax.experimental import pallas as pl
from jax.experimental.pallas import tpu as pltpu


# ----------------------------- kernel ---------------------------------------


def _softmax_last(z, *, exact):
    m = jnp.max(z, axis=-1, keepdims=True)
    e = jnp.exp(z - m)
    denom = jnp.sum(e, axis=-1, keepdims=True)
    if exact:
        return e / denom                              # exact: rows sum to 1
    return e * pl.reciprocal(denom, approx=True)      # EUP approx path


def _actor_kernel(x_ref,
                  wq1_ref, bq1_ref,          # attention1 Q  (S -> S)
                  wk1_ref, bk1_ref,          # attention1 K  (S -> S)
                  wv1f_ref, bv1f_ref, b1_ref,  # attention1 V folded with fc1 (S -> 128)
                  wqkv2_ref, bqkv2_ref,      # attention2 fused QKV (128 -> 384)
                  w2_ref, b2_ref,            # fc2 (128 -> 64)
                  w3_ref, b3_ref,            # fc3 (64 -> A)
                  o_ref):
    x = x_ref[...].astype(jnp.float32)                                       # (B, S)

    # ---- attention1 (fc1 folded into V projection) ---------------------------
    q1 = jnp.dot(x, wq1_ref[...], preferred_element_type=jnp.float32) + bq1_ref[...]
    k1 = jnp.dot(x, wk1_ref[...], preferred_element_type=jnp.float32) + bk1_ref[...]
    vf = jnp.dot(x, wv1f_ref[...], preferred_element_type=jnp.float32) + bv1f_ref[...]  # (B,128)
    s1 = jax.lax.dot_general(q1, k1, (((1,), (1,)), ((), ())),
                             preferred_element_type=jnp.float32)             # (B, B)
    a1 = _softmax_last(s1, exact=False)
    # (a1 @ (xWv + bv)) @ W1 + b1  ==  a1 @ vf + b1  (associativity; exact)
    h = jnp.dot(a1, vf, preferred_element_type=jnp.float32) + b1_ref[...]    # (B, 128)

    # ---- attention2 (d = 128, fused QKV, lane-aligned slices) ----------------
    d = 128
    qkv = jnp.dot(h, wqkv2_ref[...], preferred_element_type=jnp.float32) + bqkv2_ref[...]
    q2 = qkv[:, 0:d]
    k2 = qkv[:, d:2 * d]
    v2 = qkv[:, 2 * d:3 * d]
    s2 = jax.lax.dot_general(q2, k2, (((1,), (1,)), ((), ())),
                             preferred_element_type=jnp.float32)             # (B, B)
    a2 = _softmax_last(s2, exact=False)
    h = jnp.dot(a2, v2, preferred_element_type=jnp.float32)                  # (B, 128)

    # ---- relu -> fc2 -> relu -> fc3 -> softmax -------------------------------
    h = jnp.maximum(h, 0.0)
    h = jnp.dot(h, w2_ref[...], preferred_element_type=jnp.float32) + b2_ref[...]
    h = jnp.maximum(h, 0.0)
    h = jnp.dot(h, w3_ref[...], preferred_element_type=jnp.float32) + b3_ref[...]
    # Final, externally visible distribution: exact normalization.
    o_ref[...] = _softmax_last(h, exact=True).astype(o_ref.dtype)


# ----------------------------- wrapper ---------------------------------------


@jax.jit
def actor_forward(x, *fused_params):
    """x: (B, state_size). fused_params: output of fuse_actor_params."""
    B = x.shape[0]
    A = fused_params[-2].shape[1]          # w3t: (64, A)
    vmem = pl.BlockSpec(memory_space=pltpu.MemorySpace.VMEM)
    # No grid: the whole (tiny) problem runs in one invocation, every operand
    # is a full-array VMEM-resident block — no loop scaffolding.
    return pl.pallas_call(
        _actor_kernel,
        out_shape=jax.ShapeDtypeStruct((B, A), x.dtype),
        in_specs=[vmem] * (1 + len(fused_params)),
        out_specs=vmem,
    )(x, *fused_params)


# --------------------- parameter init / fusion (outside jit) -----------------


def init_actor_params(key, state_size, action_size, h1=128, h2=64):
    """Torch-style nn.Linear init: U(-1/sqrt(fan_in), 1/sqrt(fan_in))."""
    def linear(k, fan_in, fan_out):
        kw, kb = jax.random.split(k)
        bound = 1.0 / (fan_in ** 0.5)
        w = jax.random.uniform(kw, (fan_out, fan_in), minval=-bound, maxval=bound,
                               dtype=jnp.float32)
        b = jax.random.uniform(kb, (fan_out,), minval=-bound, maxval=bound,
                               dtype=jnp.float32)
        return w, b

    keys = jax.random.split(key, 9)
    p = {}
    p["wq1"], p["bq1"] = linear(keys[0], state_size, state_size)
    p["wk1"], p["bk1"] = linear(keys[1], state_size, state_size)
    p["wv1"], p["bv1"] = linear(keys[2], state_size, state_size)
    p["w1"], p["b1"] = linear(keys[3], state_size, h1)
    p["wq2"], p["bq2"] = linear(keys[4], h1, h1)
    p["wk2"], p["bk2"] = linear(keys[5], h1, h1)
    p["wv2"], p["bv2"] = linear(keys[6], h1, h1)
    p["w2"], p["b2"] = linear(keys[7], h1, h2)
    p["w3"], p["b3"] = linear(keys[8], h2, action_size)
    return p


def fuse_actor_params(p):
    """One-time (out-of-jit) weight preprocessing:
       * pre-transpose everything to (in, out) layout,
       * fold fc1 into attention1's V projection (exact, b1 kept separate),
       * fuse attention2's QKV into one (128, 384) matrix (lane-aligned)."""
    wq1t = p["wq1"].T                                   # (S, S)
    wk1t = p["wk1"].T                                   # (S, S)
    wv1_fold = p["wv1"].T @ p["w1"].T                   # (S, 128) = Wv1^T W1^T
    bv1_fold = (p["bv1"] @ p["w1"].T).reshape(1, -1)    # (1, 128)

    wqkv2 = jnp.concatenate([p["wq2"].T, p["wk2"].T, p["wv2"].T], axis=1)   # (128, 384)
    bqkv2 = jnp.concatenate([p["bq2"], p["bk2"], p["bv2"]]).reshape(1, -1)  # (1, 384)

    return (wq1t, p["bq1"].reshape(1, -1),
            wk1t, p["bk1"].reshape(1, -1),
            wv1_fold, bv1_fold, p["b1"].reshape(1, -1),
            wqkv2, bqkv2,
            p["w2"].T, p["b2"].reshape(1, -1),
            p["w3"].T, p["b3"].reshape(1, -1))


# ----------------------------- reference --------------------------------------


def _actor_reference(x, p):
    def attn(h, wq, bq, wk, bk, wv, bv):
        q = h @ wq.T + bq
        k = h @ wk.T + bk
        v = h @ wv.T + bv
        w = jax.nn.softmax(q @ k.T, axis=-1)   # no 1/sqrt(d), matches torch module
        return w @ v

    h = attn(x, p["wq1"], p["bq1"], p["wk1"], p["bk1"], p["wv1"], p["bv1"])
    h = h @ p["w1"].T + p["b1"]
    h = attn(h, p["wq2"], p["bq2"], p["wk2"], p["bk2"], p["wv2"], p["bv2"])
    h = jnp.maximum(h, 0.0)
    h = h @ p["w2"].T + p["b2"]
    h = jnp.maximum(h, 0.0)
    h = h @ p["w3"].T + p["b3"]
    return jax.nn.softmax(h, axis=1)


# ----------------------------- main -------------------------------------------


if __name__ == "__main__":
    B, state_size, action_size = 8, 32, 4
    key = jax.random.PRNGKey(0)
    kx, kp = jax.random.split(key)

    x = jax.random.normal(kx, (B, state_size), dtype=jnp.float32)
    params = init_actor_params(kp, state_size, action_size)
    fused = fuse_actor_params(params)          # one-time, outside the jit path

    out = actor_forward(x, *fused)
    jax.block_until_ready(out)

    ref = _actor_reference(x, params)
    assert out.shape == (B, action_size)
    # Tolerance covers pl.reciprocal(approx=True) in the two internal softmaxes.
    assert jnp.allclose(out, ref, atol=2e-3, rtol=2e-3), "mismatch vs reference"
    # Final softmax uses exact division -> rows sum to 1 (up to f32 rounding).
    assert jnp.allclose(out.sum(axis=-1), 1.0, atol=1e-3), "rows must be probability dists"

    print("KERNEL_OK")
</pallas_src>

<mosaic_0001>
module attributes {stable_mosaic.version = 11 : i64} {
  func.func @_actor_kernel(%arg0: memref<8x32xf32, #tpu.memory_space<vmem>>, %arg1: memref<32x32xf32, #tpu.memory_space<vmem>>, %arg2: memref<1x32xf32, #tpu.memory_space<vmem>>, %arg3: memref<32x32xf32, #tpu.memory_space<vmem>>, %arg4: memref<1x32xf32, #tpu.memory_space<vmem>>, %arg5: memref<32x128xf32, #tpu.memory_space<vmem>>, %arg6: memref<1x128xf32, #tpu.memory_space<vmem>>, %arg7: memref<1x128xf32, #tpu.memory_space<vmem>>, %arg8: memref<128x384xf32, #tpu.memory_space<vmem>>, %arg9: memref<1x384xf32, #tpu.memory_space<vmem>>, %arg10: memref<128x64xf32, #tpu.memory_space<vmem>>, %arg11: memref<1x64xf32, #tpu.memory_space<vmem>>, %arg12: memref<64x4xf32, #tpu.memory_space<vmem>>, %arg13: memref<1x4xf32, #tpu.memory_space<vmem>>, %arg14: memref<8x4xf32, #tpu.memory_space<vmem>>) attributes {dimension_semantics = [], scalar_prefetch = 0 : i64, scratch_operands = 0 : i64, tpu.core_type = #tpu.core_type<tc>} {
    %c0 = arith.constant 0 : index
    %c0_0 = arith.constant 0 : index
    %0 = vector.load %arg0[%c0, %c0_0] : memref<8x32xf32, #tpu.memory_space<vmem>>, vector<8x32xf32>
    %c0_1 = arith.constant 0 : index
    %c0_2 = arith.constant 0 : index
    %1 = vector.load %arg1[%c0_1, %c0_2] : memref<32x32xf32, #tpu.memory_space<vmem>>, vector<32x32xf32>
    %cst = arith.constant dense<0.000000e+00> : vector<8x32xf32>
    %2 = tpu.matmul %0, %1, %cst {dimension_numbers = #tpu.dot_dimension_numbers<[1], [0], [0], [1], [0, 0, 1, 1], [], []>} : vector<8x32xf32>, vector<32x32xf32>, vector<8x32xf32> -> vector<8x32xf32>
    %c0_3 = arith.constant 0 : index
    %c0_4 = arith.constant 0 : index
    %3 = vector.load %arg2[%c0_3, %c0_4] : memref<1x32xf32, #tpu.memory_space<vmem>>, vector<1x32xf32>
    %4 = vector.broadcast %3 : vector<1x32xf32> to vector<8x32xf32>
    %5 = arith.addf %2, %4 : vector<8x32xf32>
    %c0_5 = arith.constant 0 : index
    %c0_6 = arith.constant 0 : index
    %6 = vector.load %arg3[%c0_5, %c0_6] : memref<32x32xf32, #tpu.memory_space<vmem>>, vector<32x32xf32>
    %cst_7 = arith.constant dense<0.000000e+00> : vector<8x32xf32>
    %7 = tpu.matmul %0, %6, %cst_7 {dimension_numbers = #tpu.dot_dimension_numbers<[1], [0], [0], [1], [0, 0, 1, 1], [], []>} : vector<8x32xf32>, vector<32x32xf32>, vector<8x32xf32> -> vector<8x32xf32>
    %c0_8 = arith.constant 0 : index
    %c0_9 = arith.constant 0 : index
    %8 = vector.load %arg4[%c0_8, %c0_9] : memref<1x32xf32, #tpu.memory_space<vmem>>, vector<1x32xf32>
    %9 = vector.broadcast %8 : vector<1x32xf32> to vector<8x32xf32>
    %10 = arith.addf %7, %9 : vector<8x32xf32>
    %c0_10 = arith.constant 0 : index
    %c0_11 = arith.constant 0 : index
    %11 = vector.load %arg5[%c0_10, %c0_11] : memref<32x128xf32, #tpu.memory_space<vmem>>, vector<32x128xf32>
    %cst_12 = arith.constant dense<0.000000e+00> : vector<8x128xf32>
    %12 = tpu.matmul %0, %11, %cst_12 {dimension_numbers = #tpu.dot_dimension_numbers<[1], [0], [0], [1], [0, 0, 1, 1], [], []>} : vector<8x32xf32>, vector<32x128xf32>, vector<8x128xf32> -> vector<8x128xf32>
    %c0_13 = arith.constant 0 : index
    %c0_14 = arith.constant 0 : index
    %13 = vector.load %arg6[%c0_13, %c0_14] : memref<1x128xf32, #tpu.memory_space<vmem>>, vector<1x128xf32>
    %14 = vector.broadcast %13 : vector<1x128xf32> to vector<8x128xf32>
    %15 = arith.addf %12, %14 : vector<8x128xf32>
    %cst_15 = arith.constant dense<0.000000e+00> : vector<8x8xf32>
    %16 = tpu.matmul %5, %10, %cst_15 {dimension_numbers = #tpu.dot_dimension_numbers<[1], [1], [0], [0], [0, 0, 1, 0], [], []>} : vector<8x32xf32>, vector<8x32xf32>, vector<8x8xf32> -> vector<8x8xf32>
    %cst_16 = arith.constant dense<0xFF800000> : vector<8xf32>
    %17 = vector.multi_reduction <maximumf>, %16, %cst_16 [1] : vector<8x8xf32> to vector<8xf32>
    %18 = vector.shape_cast %17 : vector<8xf32> to vector<8x1xf32>
    %19 = vector.broadcast %18 : vector<8x1xf32> to vector<8x8xf32>
    %20 = arith.subf %16, %19 : vector<8x8xf32>
    %21 = math.exp %20 : vector<8x8xf32>
    %cst_17 = arith.constant dense<0.000000e+00> : vector<8xf32>
    %22 = vector.multi_reduction <add>, %21, %cst_17 [1] : vector<8x8xf32> to vector<8xf32>
    %23 = vector.shape_cast %22 : vector<8xf32> to vector<8x1xf32>
    %24 = tpu.reciprocal %23 {approx = true} : vector<8x1xf32> -> vector<8x1xf32>
    %25 = vector.broadcast %24 : vector<8x1xf32> to vector<8x8xf32>
    %26 = arith.mulf %21, %25 : vector<8x8xf32>
    %cst_18 = arith.constant dense<0.000000e+00> : vector<8x128xf32>
    %27 = tpu.matmul %26, %15, %cst_18 {dimension_numbers = #tpu.dot_dimension_numbers<[1], [0], [0], [1], [0, 0, 1, 1], [], []>} : vector<8x8xf32>, vector<8x128xf32>, vector<8x128xf32> -> vector<8x128xf32>
    %c0_19 = arith.constant 0 : index
    %c0_20 = arith.constant 0 : index
    %28 = vector.load %arg7[%c0_19, %c0_20] : memref<1x128xf32, #tpu.memory_space<vmem>>, vector<1x128xf32>
    %29 = vector.broadcast %28 : vector<1x128xf32> to vector<8x128xf32>
    %30 = arith.addf %27, %29 : vector<8x128xf32>
    %c0_21 = arith.constant 0 : index
    %c0_22 = arith.constant 0 : index
    %31 = vector.load %arg8[%c0_21, %c0_22] : memref<128x384xf32, #tpu.memory_space<vmem>>, vector<128x384xf32>
    %cst_23 = arith.constant dense<0.000000e+00> : vector<8x384xf32>
    %32 = tpu.matmul %30, %31, %cst_23 {dimension_numbers = #tpu.dot_dimension_numbers<[1], [0], [0], [1], [0, 0, 1, 1], [], []>} : vector<8x128xf32>, vector<128x384xf32>, vector<8x384xf32> -> vector<8x384xf32>
    %c0_24 = arith.constant 0 : index
    %c0_25 = arith.constant 0 : index
    %33 = vector.load %arg9[%c0_24, %c0_25] : memref<1x384xf32, #tpu.memory_space<vmem>>, vector<1x384xf32>
    %34 = vector.broadcast %33 : vector<1x384xf32> to vector<8x384xf32>
    %35 = arith.addf %32, %34 : vector<8x384xf32>
    %36 = vector.extract_strided_slice %35 {offsets = [0, 0], sizes = [8, 128], strides = [1, 1]} : vector<8x384xf32> to vector<8x128xf32>
    %37 = vector.extract_strided_slice %35 {offsets = [0, 128], sizes = [8, 128], strides = [1, 1]} : vector<8x384xf32> to vector<8x128xf32>
    %38 = vector.extract_strided_slice %35 {offsets = [0, 256], sizes = [8, 128], strides = [1, 1]} : vector<8x384xf32> to vector<8x128xf32>
    %cst_26 = arith.constant dense<0.000000e+00> : vector<8x8xf32>
    %39 = tpu.matmul %36, %37, %cst_26 {dimension_numbers = #tpu.dot_dimension_numbers<[1], [1], [0], [0], [0, 0, 1, 0], [], []>} : vector<8x128xf32>, vector<8x128xf32>, vector<8x8xf32> -> vector<8x8xf32>
    %cst_27 = arith.constant dense<0xFF800000> : vector<8xf32>
    %40 = vector.multi_reduction <maximumf>, %39, %cst_27 [1] : vector<8x8xf32> to vector<8xf32>
    %41 = vector.shape_cast %40 : vector<8xf32> to vector<8x1xf32>
    %42 = vector.broadcast %41 : vector<8x1xf32> to vector<8x8xf32>
    %43 = arith.subf %39, %42 : vector<8x8xf32>
    %44 = math.exp %43 : vector<8x8xf32>
    %cst_28 = arith.constant dense<0.000000e+00> : vector<8xf32>
    %45 = vector.multi_reduction <add>, %44, %cst_28 [1] : vector<8x8xf32> to vector<8xf32>
    %46 = vector.shape_cast %45 : vector<8xf32> to vector<8x1xf32>
    %47 = tpu.reciprocal %46 {approx = true} : vector<8x1xf32> -> vector<8x1xf32>
    %48 = vector.broadcast %47 : vector<8x1xf32> to vector<8x8xf32>
    %49 = arith.mulf %44, %48 : vector<8x8xf32>
    %cst_29 = arith.constant dense<0.000000e+00> : vector<8x128xf32>
    %50 = tpu.matmul %49, %38, %cst_29 {dimension_numbers = #tpu.dot_dimension_numbers<[1], [0], [0], [1], [0, 0, 1, 1], [], []>} : vector<8x8xf32>, vector<8x128xf32>, vector<8x128xf32> -> vector<8x128xf32>
    %cst_30 = arith.constant 0.000000e+00 : f32
    %51 = vector.broadcast %cst_30 : f32 to vector<8x128xf32>
    %52 = arith.maximumf %50, %51 : vector<8x128xf32>
    %c0_31 = arith.constant 0 : index
    %c0_32 = arith.constant 0 : index
    %53 = vector.load %arg10[%c0_31, %c0_32] : memref<128x64xf32, #tpu.memory_space<vmem>>, vector<128x64xf32>
    %cst_33 = arith.constant dense<0.000000e+00> : vector<8x64xf32>
    %54 = tpu.matmul %52, %53, %cst_33 {dimension_numbers = #tpu.dot_dimension_numbers<[1], [0], [0], [1], [0, 0, 1, 1], [], []>} : vector<8x128xf32>, vector<128x64xf32>, vector<8x64xf32> -> vector<8x64xf32>
    %c0_34 = arith.constant 0 : index
    %c0_35 = arith.constant 0 : index
    %55 = vector.load %arg11[%c0_34, %c0_35] : memref<1x64xf32, #tpu.memory_space<vmem>>, vector<1x64xf32>
    %56 = vector.broadcast %55 : vector<1x64xf32> to vector<8x64xf32>
    %57 = arith.addf %54, %56 : vector<8x64xf32>
    %cst_36 = arith.constant 0.000000e+00 : f32
    %58 = vector.broadcast %cst_36 : f32 to vector<8x64xf32>
    %59 = arith.maximumf %57, %58 : vector<8x64xf32>
    %c0_37 = arith.constant 0 : index
    %c0_38 = arith.constant 0 : index
    %60 = vector.load %arg12[%c0_37, %c0_38] : memref<64x4xf32, #tpu.memory_space<vmem>>, vector<64x4xf32>
    %cst_39 = arith.constant dense<0.000000e+00> : vector<8x4xf32>
    %61 = tpu.matmul %59, %60, %cst_39 {dimension_numbers = #tpu.dot_dimension_numbers<[1], [0], [0], [1], [0, 0, 1, 1], [], []>} : vector<8x64xf32>, vector<64x4xf32>, vector<8x4xf32> -> vector<8x4xf32>
    %c0_40 = arith.constant 0 : index
    %c0_41 = arith.constant 0 : index
    %62 = vector.load %arg13[%c0_40, %c0_41] : memref<1x4xf32, #tpu.memory_space<vmem>>, vector<1x4xf32>
    %63 = vector.broadcast %62 : vector<1x4xf32> to vector<8x4xf32>
    %64 = arith.addf %61, %63 : vector<8x4xf32>
    %cst_42 = arith.constant dense<0xFF800000> : vector<8xf32>
    %65 = vector.multi_reduction <maximumf>, %64, %cst_42 [1] : vector<8x4xf32> to vector<8xf32>
    %66 = vector.shape_cast %65 : vector<8xf32> to vector<8x1xf32>
    %67 = vector.broadcast %66 : vector<8x1xf32> to vector<8x4xf32>
    %68 = arith.subf %64, %67 : vector<8x4xf32>
    %69 = math.exp %68 : vector<8x4xf32>
    %cst_43 = arith.constant dense<0.000000e+00> : vector<8xf32>
    %70 = vector.multi_reduction <add>, %69, %cst_43 [1] : vector<8x4xf32> to vector<8xf32>
    %71 = vector.shape_cast %70 : vector<8xf32> to vector<8x1xf32>
    %72 = vector.broadcast %71 : vector<8x1xf32> to vector<8x4xf32>
    %73 = arith.divf %69, %72 : vector<8x4xf32>
    %c0_44 = arith.constant 0 : index
    %c0_45 = arith.constant 0 : index
    %74 = vector.load %arg14[%c0_44, %c0_45] : memref<8x4xf32, #tpu.memory_space<vmem>>, vector<8x4xf32>
    tpu.vector_store %arg14[%c0_44, %c0_45], %73 {strides = array<i32>} : memref<8x4xf32, #tpu.memory_space<vmem>>, vector<8x4xf32>,
    return
  }
}

</mosaic_0001>

<llo_original>
// kernel: actor_forward.1
$region0: #{actor_forward.1}
  #allocation0 [shape = 'u32[]', space=smem, size = 0x4, offset = 0x4, fixed_abs, tag = 'smem constant byte address 0x4 - core index']
  #allocation1 [shape = 'u32[144,128]{1,0:T(1,128)}', space=vmem, size = 0x12000, scoped, tag = 'internal scratch']
  %s0 = inlined_call_operand.vmem [shape: f32[8,32], index: 0, kind: input, shape index: {}]
  %s1 = inlined_call_operand.vmem [shape: f32[32,32], index: 1, kind: input, shape index: {}]
  %s2 = inlined_call_operand.vmem [shape: f32[1,32], index: 2, kind: input, shape index: {}]
  %s3 = inlined_call_operand.vmem [shape: f32[32,32], index: 3, kind: input, shape index: {}]
  %s4 = inlined_call_operand.vmem [shape: f32[1,32], index: 4, kind: input, shape index: {}]
  %s5 = inlined_call_operand.vmem [shape: f32[32,128], index: 5, kind: input, shape index: {}]
  %s6 = inlined_call_operand.vmem [shape: f32[1,128], index: 6, kind: input, shape index: {}]
  %s7 = inlined_call_operand.vmem [shape: f32[1,128], index: 7, kind: input, shape index: {}]
  %s8 = inlined_call_operand.hbm [shape: f32[128,384], index: 8, kind: input, shape index: {}]
  %s9 = inlined_call_operand.vmem [shape: f32[1,384], index: 9, kind: input, shape index: {}]
  %s10 = inlined_call_operand.vmem [shape: f32[128,64], index: 10, kind: input, shape index: {}]
  %s11 = inlined_call_operand.vmem [shape: f32[1,64], index: 11, kind: input, shape index: {}]
  %s12 = inlined_call_operand.vmem [shape: f32[64,4], index: 12, kind: input, shape index: {}]
  %s13 = inlined_call_operand.vmem [shape: f32[1,4], index: 13, kind: input, shape index: {}]
  %s14 = inlined_call_operand.vmem [shape: f32[8,4], index: 14, kind: output, shape index: {}]
  %s15 = sld [smem:[#allocation0]]
  $region70: #{actor_forward.1} parent=0
    _
  %s17 = ssub.s32 1, %s15
  %s18 = scalar_select 0, %s17, %s15
  $region1: #{actor_forward.1} parent=0
    #allocation2 [shape = 'u8[196608]{0}', space=vmem, size = 0x30000, scoped, tag = 'input window, operand 8, single buffered']
    #allocation3 [shape = 's32[1]{0}', space=sflag, size = 0x4, scoped, tag = 'scoped memory for actor_forward.1']
    %19 = vsyncpa [#allocation3], 0
    // Predicated region
    $region2: #{actor_forward.1} parent=1 // pred_check
      _
    $region3: #{actor_forward.1} parent=1 // pred_check_branch
      %21 = sbr.rel (0) target = $region5
    $region4: #{actor_forward.1} parent=1 // pred_region
      _
    $region5: #{actor_forward.1} parent=1 // pred_fallthru
      _
    // Predicated region
    $region6: #{actor_forward.1} parent=1 // pred_check
      _
    $region7: #{actor_forward.1} parent=1 // pred_check_branch
      %23 = sbr.rel (0) target = $region9
    $region8: #{actor_forward.1} parent=1 // pred_region
      _
    $region9: #{actor_forward.1} parent=1 // pred_fallthru
      _
    // Predicated region
    $region10: #{actor_forward.1} parent=1 // pred_check
      _
    $region11: #{actor_forward.1} parent=1 // pred_check_branch
      %25 = sbr.rel (0) target = $region13
    $region12: #{actor_forward.1} parent=1 // pred_region
      _
    $region13: #{actor_forward.1} parent=1 // pred_fallthru
      _
    // Predicated region
    $region14: #{actor_forward.1} parent=1 // pred_check
      _
    $region15: #{actor_forward.1} parent=1 // pred_check_branch
      %27 = sbr.rel (0) target = $region17
    $region16: #{actor_forward.1} parent=1 // pred_region
      _
    $region17: #{actor_forward.1} parent=1 // pred_fallthru
      _
    // Predicated region
    $region18: #{actor_forward.1} parent=1 // pred_check
      _
    $region19: #{actor_forward.1} parent=1 // pred_check_branch
      %29 = sbr.rel (0) target = $region21
    $region20: #{actor_forward.1} parent=1 // pred_region
      _
    $region21: #{actor_forward.1} parent=1 // pred_fallthru
      _
    // Predicated region
    $region22: #{actor_forward.1} parent=1 // pred_check
      _
    $region23: #{actor_forward.1} parent=1 // pred_check_branch
      %31 = sbr.rel (0) target = $region25
    $region24: #{actor_forward.1} parent=1 // pred_region
      _
    $region25: #{actor_forward.1} parent=1 // pred_fallthru
      _
    // Predicated region
    $region26: #{actor_forward.1} parent=1 // pred_check
      _
    $region27: #{actor_forward.1} parent=1 // pred_check_branch
      %33 = sbr.rel (0) target = $region29
    $region28: #{actor_forward.1} parent=1 // pred_region
      _
    $region29: #{actor_forward.1} parent=1 // pred_fallthru
      _
    // Predicated region
    $region30: #{actor_forward.1} parent=1 // pred_check
      _
    $region31: #{actor_forward.1} parent=1 // pred_check_branch
      %35 = sbr.rel (0) target = $region33
    $region32: #{actor_forward.1} parent=1 // pred_region
      _
    $region33: #{actor_forward.1} parent=1 // pred_fallthru
      _
    // Predicated region
    $region34: #{actor_forward.1} parent=1 // pred_check
      _
    $region35: #{actor_forward.1} parent=1 // pred_check_branch
      %37 = sbr.rel (0) target = $region37
    $region36: #{actor_forward.1} parent=1 // pred_region
      %s39 = ssub.s32 6144, 6144
      %40 = vsyncadd [#allocation3], %s39
      %s41 = sshll.u32 [#allocation2], 4
      %s42 = int_to_ptr.vmem [resolvable:$true] %s41
      %47 = dma.hbm_to_vmem [thread:$0]  %s8, 6144, %s42, [#allocation3], 384, 384, 24
    $region37: #{actor_forward.1} parent=1 // pred_fallthru
      _
    // Predicated region
    $region38: #{actor_forward.1} parent=1 // pred_check
      _
    $region39: #{actor_forward.1} parent=1 // pred_check_branch
      %49 = sbr.rel (0) target = $region41
    $region40: #{actor_forward.1} parent=1 // pred_region
      _
    $region41: #{actor_forward.1} parent=1 // pred_fallthru
      _
    // Predicated region
    $region42: #{actor_forward.1} parent=1 // pred_check
      _
    $region43: #{actor_forward.1} parent=1 // pred_check_branch
      %51 = sbr.rel (0) target = $region45
    $region44: #{actor_forward.1} parent=1 // pred_region
      _
    $region45: #{actor_forward.1} parent=1 // pred_fallthru
      _
    // Predicated region
    $region46: #{actor_forward.1} parent=1 // pred_check
      _
    $region47: #{actor_forward.1} parent=1 // pred_check_branch
      %53 = sbr.rel (0) target = $region49
    $region48: #{actor_forward.1} parent=1 // pred_region
      _
    $region49: #{actor_forward.1} parent=1 // pred_fallthru
      _
    // Predicated region
    $region50: #{actor_forward.1} parent=1 // pred_check
      _
    $region51: #{actor_forward.1} parent=1 // pred_check_branch
      %55 = sbr.rel (0) target = $region53
    $region52: #{actor_forward.1} parent=1 // pred_region
      _
    $region53: #{actor_forward.1} parent=1 // pred_fallthru
      _
    // Predicated region
    $region54: #{actor_forward.1} parent=1 // pred_check
      _
    $region55: #{actor_forward.1} parent=1 // pred_check_branch
      %57 = sbr.rel (0) target = $region57
    $region56: #{actor_forward.1} parent=1 // pred_region
      _
    $region57: #{actor_forward.1} parent=1 // pred_fallthru
      _
    // Predicated region
    $region58: #{actor_forward.1} parent=1 // pred_check
      _
    $region59: #{actor_forward.1} parent=1 // pred_check_branch
      %59 = sbr.rel (0) target = $region61
    $region60: #{actor_forward.1} parent=1 // pred_region
      %60 = dma.done [#allocation3], 6144
    $region61: #{actor_forward.1} parent=1 // pred_fallthru
      _
    %v61 = vld [vmem:[%s0] sm:$0xff]
    %v62 = vld [vmem:[%s1] sm:$0xff]
    %v63 = vld [vmem:[%s1 + $0x8] sm:$0xff]
    %v64 = vld [vmem:[%s1 + $0x10] sm:$0xff]
    %v65 = vld [vmem:[%s1 + $0x18] sm:$0xff]
    %v66 = vld [vmem:[%s2] sm:$0x1]
    %v68 = vlaneseq
    %v69 = vshrl.u32 %v68, 7
    %v70 = vsub.s32 0, %v69
    %v71 = vrot.slane %v66, %v70
    %vm73 = vcmask 261120
    %v75 = vsel %vm73, %v61, 0
    %77 = vmatprep.subr.mxu0 0.0
    %78 = vmatpush1.msra.mxu0 0.0
    %79 = vmatprep.subr.mxu0 0.0
    %80 = vmatpush1.msra.mxu0 0.0
    %81 = vmatprep.subr.mxu0 0.0
    %82 = vmatpush1.msra.mxu0 0.0
    %83 = vmatprep.subr.mxu0 0.0
    %84 = vmatpush1.msra.mxu0 0.0
    %85 = vmatprep.subr.mxu0 0.0
    %86 = vmatpush1.msra.mxu0 0.0
    %87 = vmatprep.subr.mxu0 0.0
    %88 = vmatpush1.msra.mxu0 0.0
    %89 = vmatprep.subr.mxu0 0.0
    %90 = vmatpush1.msra.mxu0 0.0
    %91 = vmatprep.subr.mxu0 0.0
    %92 = vmatpush1.msra.mxu0 0.0
    %93 = vmatprep.subr.mxu0 0.0
    %94 = vmatpush1.msra.mxu0 0.0
    %95 = vmatprep.subr.mxu0 0.0
    %96 = vmatpush1.msra.mxu0 0.0
    %97 = vmatprep.subr.mxu0 0.0
    %98 = vmatpush1.msra.mxu0 0.0
    %99 = vmatprep.subr.mxu0 0.0
    %100 = vmatpush1.msra.mxu0 0.0
    %101 = vmatprep.subr.mxu0 0.0
    %102 = vmatpush1.msra.mxu0 %v65
    %103 = vmatprep.subr.mxu0 0.0
    %104 = vmatpush1.msra.mxu0 %v64
    %105 = vmatprep.subr.mxu0 0.0
    %106 = vmatpush1.msra.mxu0 %v63
    %107 = vmatprep.subr.mxu0 0.0
    %108 = vmatpush1.msra.mxu0 %v62
    %109 = vmatprep.subr.mxu0 0.0
    %110 = vmatpush2.msra.mxu0 0.0
    %111 = vmatprep.subr.mxu0 0.0
    %112 = vmatpush2.msra.mxu0 0.0
    %113 = vmatprep.subr.mxu0 0.0
    %114 = vmatpush2.msra.mxu0 0.0
    %115 = vmatprep.subr.mxu0 0.0
    %116 = vmatpush2.msra.mxu0 0.0
    %117 = vmatprep.subr.mxu0 0.0
    %118 = vmatpush2.msra.mxu0 0.0
    %119 = vmatprep.subr.mxu0 0.0
    %120 = vmatpush2.msra.mxu0 0.0
    %121 = vmatprep.subr.mxu0 0.0
    %122 = vmatpush2.msra.mxu0 0.0
    %123 = vmatprep.subr.mxu0 0.0
    %124 = vmatpush2.msra.mxu0 0.0
    %125 = vmatprep.subr.mxu0 0.0
    %126 = vmatpush2.msra.mxu0 0.0
    %127 = vmatprep.subr.mxu0 0.0
    %128 = vmatpush2.msra.mxu0 0.0
    %129 = vmatprep.subr.mxu0 0.0
    %130 = vmatpush2.msra.mxu0 0.0
    %131 = vmatprep.subr.mxu0 0.0
    %132 = vmatpush2.msra.mxu0 0.0
    %133 = vmatprep.subr.mxu0 0.0
    %134 = vmatpush2.msra.mxu0 0.0
    %135 = vmatprep.subr.mxu0 0.0
    %136 = vmatpush2.msra.mxu0 0.0
    %137 = vmatprep.subr.mxu0 0.0
    %138 = vmatpush2.msra.mxu0 0.0
    %139 = vmatprep.subr.mxu0 0.0
    %140 = vmatpush2.msra.mxu0 0.0
    %141 = vmatprep.mubr.f32.mxu0 0.0
    %142 = vmatmul.mubr.f32.gmra.mxu0 %v75
    %v143 = vpop.f32.mrf.mxu0
    %v144 = vadd.f32 %v71, %v143
    %v145 = vpop.f32.mrf.mxu0
    %146 = vdwg.mxu0
    %v147 = vld [vmem:[%s3] sm:$0xff]
    %v148 = vld [vmem:[%s3 + $0x8] sm:$0xff]
    %v149 = vld [vmem:[%s3 + $0x10] sm:$0xff]
    %v150 = vld [vmem:[%s3 + $0x18] sm:$0xff]
    %v151 = vld [vmem:[%s4] sm:$0x1]
    %v153 = vlaneseq
    %v154 = vshrl.u32 %v153, 7
    %v155 = vsub.s32 0, %v154
    %v156 = vrot.slane %v151, %v155
    %158 = vmatprep.subr.mxu0 0.0
    %159 = vmatpush1.msra.mxu0 0.0
    %160 = vmatprep.subr.mxu0 0.0
    %161 = vmatpush1.msra.mxu0 0.0
    %162 = vmatprep.subr.mxu0 0.0
    %163 = vmatpush1.msra.mxu0 0.0
    %164 = vmatprep.subr.mxu0 0.0
    %165 = vmatpush1.msra.mxu0 0.0
    %166 = vmatprep.subr.mxu0 0.0
    %167 = vmatpush1.msra.mxu0 0.0
    %168 = vmatprep.subr.mxu0 0.0
    %169 = vmatpush1.msra.mxu0 0.0
    %170 = vmatprep.subr.mxu0 0.0
    %171 = vmatpush1.msra.mxu0 0.0
    %172 = vmatprep.subr.mxu0 0.0
    %173 = vmatpush1.msra.mxu0 0.0
    %174 = vmatprep.subr.mxu0 0.0
    %175 = vmatpush1.msra.mxu0 0.0
    %176 = vmatprep.subr.mxu0 0.0
    %177 = vmatpush1.msra.mxu0 0.0
    %178 = vmatprep.subr.mxu0 0.0
    %179 = vmatpush1.msra.mxu0 0.0
    %180 = vmatprep.subr.mxu0 0.0
    %181 = vmatpush1.msra.mxu0 0.0
    %182 = vmatprep.subr.mxu0 0.0
    %183 = vmatpush1.msra.mxu0 %v150
    %184 = vmatprep.subr.mxu0 0.0
    %185 = vmatpush1.msra.mxu0 %v149
    %186 = vmatprep.subr.mxu0 0.0
    %187 = vmatpush1.msra.mxu0 %v148
    %188 = vmatprep.subr.mxu0 0.0
    %189 = vmatpush1.msra.mxu0 %v147
    %190 = vmatprep.subr.mxu0 0.0
    %191 = vmatpush2.msra.mxu0 0.0
    %192 = vmatprep.subr.mxu0 0.0
    %193 = vmatpush2.msra.mxu0 0.0
    %194 = vmatprep.subr.mxu0 0.0
    %195 = vmatpush2.msra.mxu0 0.0
    %196 = vmatprep.subr.mxu0 0.0
    %197 = vmatpush2.msra.mxu0 0.0
    %198 = vmatprep.subr.mxu0 0.0
    %199 = vmatpush2.msra.mxu0 0.0
    %200 = vmatprep.subr.mxu0 0.0
    %201 = vmatpush2.msra.mxu0 0.0
    %202 = vmatprep.subr.mxu0 0.0
    %203 = vmatpush2.msra.mxu0 0.0
    %204 = vmatprep.subr.mxu0 0.0
    %205 = vmatpush2.msra.mxu0 0.0
    %206 = vmatprep.subr.mxu0 0.0
    %207 = vmatpush2.msra.mxu0 0.0
    %208 = vmatprep.subr.mxu0 0.0
    %209 = vmatpush2.msra.mxu0 0.0
    %210 = vmatprep.subr.mxu0 0.0
    %211 = vmatpush2.msra.mxu0 0.0
    %212 = vmatprep.subr.mxu0 0.0
    %213 = vmatpush2.msra.mxu0 0.0
    %214 = vmatprep.subr.mxu0 0.0
    %215 = vmatpush2.msra.mxu0 0.0
    %216 = vmatprep.subr.mxu0 0.0
    %217 = vmatpush2.msra.mxu0 0.0
    %218 = vmatprep.subr.mxu0 0.0
    %219 = vmatpush2.msra.mxu0 0.0
    %220 = vmatprep.subr.mxu0 0.0
    %221 = vmatpush2.msra.mxu0 0.0
    %222 = vmatprep.mubr.f32.mxu0 0.0
    %223 = vmatmul.mubr.f32.gmra.mxu0 %v75
    %v224 = vpop.f32.mrf.mxu0
    %v225 = vadd.f32 %v156, %v224
    %v226 = vpop.f32.mrf.mxu0
    %227 = vdwg.mxu0
    %v228 = vld [vmem:[%s5] sm:$0xff]
    %v229 = vld [vmem:[%s5 + $0x8] sm:$0xff]
    %v230 = vld [vmem:[%s5 + $0x10] sm:$0xff]
    %v231 = vld [vmem:[%s5 + $0x18] sm:$0xff]
    %v232 = vld [vmem:[%s6] sm:$0x1]
    %v234 = vlaneseq
    %v235 = vshrl.u32 %v234, 7
    %v236 = vsub.s32 0, %v235
    %v237 = vrot.slane %v232, %v236
    %239 = vmatprep.subr.mxu0 0.0
    %240 = vmatpush1.msra.mxu0 0.0
    %241 = vmatprep.subr.mxu0 0.0
    %242 = vmatpush1.msra.mxu0 0.0
    %243 = vmatprep.subr.mxu0 0.0
    %244 = vmatpush1.msra.mxu0 0.0
    %245 = vmatprep.subr.mxu0 0.0
    %246 = vmatpush1.msra.mxu0 0.0
    %247 = vmatprep.subr.mxu0 0.0
    %248 = vmatpush1.msra.mxu0 0.0
    %249 = vmatprep.subr.mxu0 0.0
    %250 = vmatpush1.msra.mxu0 0.0
    %251 = vmatprep.subr.mxu0 0.0
    %252 = vmatpush1.msra.mxu0 0.0
    %253 = vmatprep.subr.mxu0 0.0
    %254 = vmatpush1.msra.mxu0 0.0
    %255 = vmatprep.subr.mxu0 0.0
    %256 = vmatpush1.msra.mxu0 0.0
    %257 = vmatprep.subr.mxu0 0.0
    %258 = vmatpush1.msra.mxu0 0.0
    %259 = vmatprep.subr.mxu0 0.0
    %260 = vmatpush1.msra.mxu0 0.0
    %261 = vmatprep.subr.mxu0 0.0
    %262 = vmatpush1.msra.mxu0 0.0
    %263 = vmatprep.subr.mxu0 0.0
    %264 = vmatpush1.msra.mxu0 %v231
    %265 = vmatprep.subr.mxu0 0.0
    %266 = vmatpush1.msra.mxu0 %v230
    %267 = vmatprep.subr.mxu0 0.0
    %268 = vmatpush1.msra.mxu0 %v229
    %269 = vmatprep.subr.mxu0 0.0
    %270 = vmatpush1.msra.mxu0 %v228
    %271 = vmatprep.subr.mxu0 0.0
    %272 = vmatpush2.msra.mxu0 0.0
    %273 = vmatprep.subr.mxu0 0.0
    %274 = vmatpush2.msra.mxu0 0.0
    %275 = vmatprep.subr.mxu0 0.0
    %276 = vmatpush2.msra.mxu0 0.0
    %277 = vmatprep.subr.mxu0 0.0
    %278 = vmatpush2.msra.mxu0 0.0
    %279 = vmatprep.subr.mxu0 0.0
    %280 = vmatpush2.msra.mxu0 0.0
    %281 = vmatprep.subr.mxu0 0.0
    %282 = vmatpush2.msra.mxu0 0.0
    %283 = vmatprep.subr.mxu0 0.0
    %284 = vmatpush2.msra.mxu0 0.0
    %285 = vmatprep.subr.mxu0 0.0
    %286 = vmatpush2.msra.mxu0 0.0
    %287 = vmatprep.subr.mxu0 0.0
    %288 = vmatpush2.msra.mxu0 0.0
    %289 = vmatprep.subr.mxu0 0.0
    %290 = vmatpush2.msra.mxu0 0.0
    %291 = vmatprep.subr.mxu0 0.0
    %292 = vmatpush2.msra.mxu0 0.0
    %293 = vmatprep.subr.mxu0 0.0
    %294 = vmatpush2.msra.mxu0 0.0
    %295 = vmatprep.subr.mxu0 0.0
    %296 = vmatpush2.msra.mxu0 0.0
    %297 = vmatprep.subr.mxu0 0.0
    %298 = vmatpush2.msra.mxu0 0.0
    %299 = vmatprep.subr.mxu0 0.0
    %300 = vmatpush2.msra.mxu0 0.0
    %301 = vmatprep.subr.mxu0 0.0
    %302 = vmatpush2.msra.mxu0 0.0
    %303 = vmatprep.mubr.f32.mxu0 0.0
    %304 = vmatmul.mubr.f32.gmra.mxu0 %v75
    %v305 = vpop.f32.mrf.mxu0
    %v306 = vadd.f32 %v237, %v305
    %v307 = vpop.f32.mrf.mxu0
    %308 = vdwg.mxu0
    %v310 = vsel %vm73, %v144, 0
    %v313 = vsel %vm73, %v225, 0
    %315 = vmatprep.subr.mxu0 0.0
    %316 = vmatpush1.xpose.msra.mxu0 0.0
    %317 = vmatprep.subr.mxu0 0.0
    %318 = vmatpush1.xpose.msra.mxu0 0.0
    %319 = vmatprep.subr.mxu0 0.0
    %320 = vmatpush1.xpose.msra.mxu0 0.0
    %321 = vmatprep.subr.mxu0 0.0
    %322 = vmatpush1.xpose.msra.mxu0 0.0
    %323 = vmatprep.subr.mxu0 0.0
    %324 = vmatpush1.xpose.msra.mxu0 0.0
    %325 = vmatprep.subr.mxu0 0.0
    %326 = vmatpush1.xpose.msra.mxu0 0.0
    %327 = vmatprep.subr.mxu0 0.0
    %328 = vmatpush1.xpose.msra.mxu0 0.0
    %329 = vmatprep.subr.mxu0 0.0
    %330 = vmatpush1.xpose.msra.mxu0 0.0
    %331 = vmatprep.subr.mxu0 0.0
    %332 = vmatpush1.xpose.msra.mxu0 0.0
    %333 = vmatprep.subr.mxu0 0.0
    %334 = vmatpush1.xpose.msra.mxu0 0.0
    %335 = vmatprep.subr.mxu0 0.0
    %336 = vmatpush1.xpose.msra.mxu0 0.0
    %337 = vmatprep.subr.mxu0 0.0
    %338 = vmatpush1.xpose.msra.mxu0 0.0
    %339 = vmatprep.subr.mxu0 0.0
    %340 = vmatpush1.xpose.msra.mxu0 0.0
    %341 = vmatprep.subr.mxu0 0.0
    %342 = vmatpush1.xpose.msra.mxu0 0.0
    %343 = vmatprep.subr.mxu0 0.0
    %344 = vmatpush1.xpose.msra.mxu0 0.0
    %345 = vmatprep.subr.mxu0 0.0
    %346 = vmatpush1.xpose.msra.mxu0 %v313
    %347 = vmatprep.subr.mxu0 0.0
    %348 = vmatpush2.xpose.msra.mxu0 0.0
    %349 = vmatprep.subr.mxu0 0.0
    %350 = vmatpush2.xpose.msra.mxu0 0.0
    %351 = vmatprep.subr.mxu0 0.0
    %352 = vmatpush2.xpose.msra.mxu0 0.0
    %353 = vmatprep.subr.mxu0 0.0
    %354 = vmatpush2.xpose.msra.mxu0 0.0
    %355 = vmatprep.subr.mxu0 0.0
    %356 = vmatpush2.xpose.msra.mxu0 0.0
    %357 = vmatprep.subr.mxu0 0.0
    %358 = vmatpush2.xpose.msra.mxu0 0.0
    %359 = vmatprep.subr.mxu0 0.0
    %360 = vmatpush2.xpose.msra.mxu0 0.0
    %361 = vmatprep.subr.mxu0 0.0
    %362 = vmatpush2.xpose.msra.mxu0 0.0
    %363 = vmatprep.subr.mxu0 0.0
    %364 = vmatpush2.xpose.msra.mxu0 0.0
    %365 = vmatprep.subr.mxu0 0.0
    %366 = vmatpush2.xpose.msra.mxu0 0.0
    %367 = vmatprep.subr.mxu0 0.0
    %368 = vmatpush2.xpose.msra.mxu0 0.0
    %369 = vmatprep.subr.mxu0 0.0
    %370 = vmatpush2.xpose.msra.mxu0 0.0
    %371 = vmatprep.subr.mxu0 0.0
    %372 = vmatpush2.xpose.msra.mxu0 0.0
    %373 = vmatprep.subr.mxu0 0.0
    %374 = vmatpush2.xpose.msra.mxu0 0.0
    %375 = vmatprep.subr.mxu0 0.0
    %376 = vmatpush2.xpose.msra.mxu0 0.0
    %377 = vmatprep.subr.mxu0 0.0
    %378 = vmatpush2.xpose.msra.mxu0 0.0
    %379 = vmatprep.mubr.f32.mxu0 0.0
    %380 = vmatmul.mubr.f32.gmra.mxu0 %v310
    %v381 = vpop.f32.mrf.mxu0
    %v382 = vadd.f32 0.0, %v381
    %v383 = vpop.f32.mrf.mxu0
    %384 = vdwg.mxu0
    %vm385 = vcmask 64512
    %v386 = vsel %vm385, %v382, -inf
    %387 = vmax.xlane.f32.xlu0 %v386
    %v388 = vpop.xlane.xlu0 %387
    %v389 = vsub.f32 %v382, %v388
    %v390 = vmul.f32 %v389, 1.442695
    %v391 = vpow.pop %v390
    %v392 = vsel %vm385, %v391, 0.0
    %393 = vadd.xlane.f32.xlu0 %v392
    %v394 = vpop.xlane.xlu0 %393
    %v395 = vrcp.pop %v394
    %v396 = vmul.f32 %v391, %v395
    %v397 = vld [vmem:[%s7] sm:$0x1]
    %v399 = vlaneseq
    %v400 = vshrl.u32 %v399, 7
    %v401 = vsub.s32 0, %v400
    %v402 = vrot.slane %v397, %v401
    %v405 = vsel %vm385, %v396, 0
    %407 = vmatprep.subr.mxu0 0.0
    %408 = vmatpush1.msra.mxu0 0.0
    %409 = vmatprep.subr.mxu0 0.0
    %410 = vmatpush1.msra.mxu0 0.0
    %411 = vmatprep.subr.mxu0 0.0
    %412 = vmatpush1.msra.mxu0 0.0
    %413 = vmatprep.subr.mxu0 0.0
    %414 = vmatpush1.msra.mxu0 0.0
    %415 = vmatprep.subr.mxu0 0.0
    %416 = vmatpush1.msra.mxu0 0.0
    %417 = vmatprep.subr.mxu0 0.0
    %418 = vmatpush1.msra.mxu0 0.0
    %419 = vmatprep.subr.mxu0 0.0
    %420 = vmatpush1.msra.mxu0 0.0
    %421 = vmatprep.subr.mxu0 0.0
    %422 = vmatpush1.msra.mxu0 0.0
    %423 = vmatprep.subr.mxu0 0.0
    %424 = vmatpush1.msra.mxu0 0.0
    %425 = vmatprep.subr.mxu0 0.0
    %426 = vmatpush1.msra.mxu0 0.0
    %427 = vmatprep.subr.mxu0 0.0
    %428 = vmatpush1.msra.mxu0 0.0
    %429 = vmatprep.subr.mxu0 0.0
    %430 = vmatpush1.msra.mxu0 0.0
    %431 = vmatprep.subr.mxu0 0.0
    %432 = vmatpush1.msra.mxu0 0.0
    %433 = vmatprep.subr.mxu0 0.0
    %434 = vmatpush1.msra.mxu0 0.0
    %435 = vmatprep.subr.mxu0 0.0
    %436 = vmatpush1.msra.mxu0 0.0
    %437 = vmatprep.subr.mxu0 0.0
    %438 = vmatpush1.msra.mxu0 %v306
    %439 = vmatprep.subr.mxu0 0.0
    %440 = vmatpush2.msra.mxu0 0.0
    %441 = vmatprep.subr.mxu0 0.0
    %442 = vmatpush2.msra.mxu0 0.0
    %443 = vmatprep.subr.mxu0 0.0
    %444 = vmatpush2.msra.mxu0 0.0
    %445 = vmatprep.subr.mxu0 0.0
    %446 = vmatpush2.msra.mxu0 0.0
    %447 = vmatprep.subr.mxu0 0.0
    %448 = vmatpush2.msra.mxu0 0.0
    %449 = vmatprep.subr.mxu0 0.0
    %450 = vmatpush2.msra.mxu0 0.0
    %451 = vmatprep.subr.mxu0 0.0
    %452 = vmatpush2.msra.mxu0 0.0
    %453 = vmatprep.subr.mxu0 0.0
    %454 = vmatpush2.msra.mxu0 0.0
    %455 = vmatprep.subr.mxu0 0.0
    %456 = vmatpush2.msra.mxu0 0.0
    %457 = vmatprep.subr.mxu0 0.0
    %458 = vmatpush2.msra.mxu0 0.0
    %459 = vmatprep.subr.mxu0 0.0
    %460 = vmatpush2.msra.mxu0 0.0
    %461 = vmatprep.subr.mxu0 0.0
    %462 = vmatpush2.msra.mxu0 0.0
    %463 = vmatprep.subr.mxu0 0.0
    %464 = vmatpush2.msra.mxu0 0.0
    %465 = vmatprep.subr.mxu0 0.0
    %466 = vmatpush2.msra.mxu0 0.0
    %467 = vmatprep.subr.mxu0 0.0
    %468 = vmatpush2.msra.mxu0 0.0
    %469 = vmatprep.subr.mxu0 0.0
    %470 = vmatpush2.msra.mxu0 0.0
    %471 = vmatprep.mubr.f32.mxu0 0.0
    %472 = vmatmul.mubr.f32.gmra.mxu0 %v405
    %v473 = vpop.f32.mrf.mxu0
    %v474 = vadd.f32 %v402, %v473
    %v475 = vpop.f32.mrf.mxu0
    %476 = vdwg.mxu0
    %v477 = vld [vmem:[#allocation2] sm:$0xff]
    %v478 = vld [vmem:[#allocation2 + $0x8] sm:$0xff]
    %v479 = vld [vmem:[#allocation2 + $0x10] sm:$0xff]
    %v480 = vld [vmem:[#allocation2 + $0x18] sm:$0xff]
    %v481 = vld [vmem:[#allocation2 + $0x20] sm:$0xff]
    %v482 = vld [vmem:[#allocation2 + $0x28] sm:$0xff]
    %v483 = vld [vmem:[#allocation2 + $0x30] sm:$0xff]
    %v484 = vld [vmem:[#allocation2 + $0x38] sm:$0xff]
    %v485 = vld [vmem:[#allocation2 + $0x40] sm:$0xff]
    %v486 = vld [vmem:[#allocation2 + $0x48] sm:$0xff]
    %v487 = vld [vmem:[#allocation2 + $0x50] sm:$0xff]
    %v488 = vld [vmem:[#allocation2 + $0x58] sm:$0xff]
    %v489 = vld [vmem:[#allocation2 + $0x60] sm:$0xff]
    %v490 = vld [vmem:[#allocation2 + $0x68] sm:$0xff]
    %v491 = vld [vmem:[#allocation2 + $0x70] sm:$0xff]
    %v492 = vld [vmem:[#allocation2 + $0x78] sm:$0xff]
    %v493 = vld [vmem:[#allocation2 + $0x80] sm:$0xff]
    %v494 = vld [vmem:[#allocation2 + $0x88] sm:$0xff]
    %v495 = vld [vmem:[#allocation2 + $0x90] sm:$0xff]
    %v496 = vld [vmem:[#allocation2 + $0x98] sm:$0xff]
    %v497 = vld [vmem:[#allocation2 + $0xa0] sm:$0xff]
    %v498 = vld [vmem:[#allocation2 + $0xa8] sm:$0xff]
    %v499 = vld [vmem:[#allocation2 + $0xb0] sm:$0xff]
    %v500 = vld [vmem:[#allocation2 + $0xb8] sm:$0xff]
    %v501 = vld [vmem:[#allocation2 + $0xc0] sm:$0xff]
    %v502 = vld [vmem:[#allocation2 + $0xc8] sm:$0xff]
    %v503 = vld [vmem:[#allocation2 + $0xd0] sm:$0xff]
    %v504 = vld [vmem:[#allocation2 + $0xd8] sm:$0xff]
    %v505 = vld [vmem:[#allocation2 + $0xe0] sm:$0xff]
    %v506 = vld [vmem:[#allocation2 + $0xe8] sm:$0xff]
    %v507 = vld [vmem:[#allocation2 + $0xf0] sm:$0xff]
    %v508 = vld [vmem:[#allocation2 + $0xf8] sm:$0xff]
    %v509 = vld [vmem:[#allocation2 + $0x100] sm:$0xff]
    %v510 = vld [vmem:[#allocation2 + $0x108] sm:$0xff]
    %v511 = vld [vmem:[#allocation2 + $0x110] sm:$0xff]
    %v512 = vld [vmem:[#allocation2 + $0x118] sm:$0xff]
    %v513 = vld [vmem:[#allocation2 + $0x120] sm:$0xff]
    %v514 = vld [vmem:[#allocation2 + $0x128] sm:$0xff]
    %v515 = vld [vmem:[#allocation2 + $0x130] sm:$0xff]
    %v516 = vld [vmem:[#allocation2 + $0x138] sm:$0xff]
    %v517 = vld [vmem:[#allocation2 + $0x140] sm:$0xff]
    %v518 = vld [vmem:[#allocation2 + $0x148] sm:$0xff]
    %v519 = vld [vmem:[#allocation2 + $0x150] sm:$0xff]
    %v520 = vld [vmem:[#allocation2 + $0x158] sm:$0xff]
    %v521 = vld [vmem:[#allocation2 + $0x160] sm:$0xff]
    %v522 = vld [vmem:[#allocation2 + $0x168] sm:$0xff]
    %v523 = vld [vmem:[#allocation2 + $0x170] sm:$0xff]
    %v524 = vld [vmem:[#allocation2 + $0x178] sm:$0xff]
    %v525 = vld [vmem:[%s9] sm:$0x7]
    %v527 = vlaneseq
    %v528 = vshrl.u32 %v527, 7
    %v529 = vsub.s32 0, %v528
    %v530 = vrot.slane %v525, %v529
    %v531 = vlaneseq
    %v532 = vshrl.u32 %v531, 7
    %v533 = vsub.s32 1, %v532
    %v534 = vrot.slane %v525, %v533
    %v535 = vlaneseq
    %v536 = vshrl.u32 %v535, 7
    %v537 = vsub.s32 2, %v536
    %v538 = vrot.slane %v525, %v537
    %542 = vmatprep.subr.mxu0 %v523
    %543 = vmatpush1.msra.mxu0 %v522
    %544 = vmatprep.subr.mxu0 %v520
    %545 = vmatpush1.msra.mxu0 %v519
    %546 = vmatprep.subr.mxu0 %v517
    %547 = vmatpush1.msra.mxu0 %v516
    %548 = vmatprep.subr.mxu0 %v514
    %549 = vmatpush1.msra.mxu0 %v513
    %550 = vmatprep.subr.mxu0 %v511
    %551 = vmatpush1.msra.mxu0 %v510
    %552 = vmatprep.subr.mxu0 %v508
    %553 = vmatpush1.msra.mxu0 %v507
    %554 = vmatprep.subr.mxu0 %v505
    %555 = vmatpush1.msra.mxu0 %v504
    %556 = vmatprep.subr.mxu0 %v502
    %557 = vmatpush1.msra.mxu0 %v501
    %558 = vmatprep.subr.mxu0 %v499
    %559 = vmatpush1.msra.mxu0 %v498
    %560 = vmatprep.subr.mxu0 %v496
    %561 = vmatpush1.msra.mxu0 %v495
    %562 = vmatprep.subr.mxu0 %v493
    %563 = vmatpush1.msra.mxu0 %v492
    %564 = vmatprep.subr.mxu0 %v490
    %565 = vmatpush1.msra.mxu0 %v489
    %566 = vmatprep.subr.mxu0 %v487
    %567 = vmatpush1.msra.mxu0 %v486
    %568 = vmatprep.subr.mxu0 %v484
    %569 = vmatpush1.msra.mxu0 %v483
    %570 = vmatprep.subr.mxu0 %v481
    %571 = vmatpush1.msra.mxu0 %v480
    %572 = vmatprep.subr.mxu0 %v478
    %573 = vmatpush1.msra.mxu0 %v477
    %574 = vmatprep.subr.mxu0 0.0
    %575 = vmatpush2.msra.mxu0 0.0
    %576 = vmatprep.subr.mxu0 0.0
    %577 = vmatpush2.msra.mxu0 0.0
    %578 = vmatprep.subr.mxu0 0.0
    %579 = vmatpush2.msra.mxu0 0.0
    %580 = vmatprep.subr.mxu0 0.0
    %581 = vmatpush2.msra.mxu0 0.0
    %582 = vmatprep.subr.mxu0 0.0
    %583 = vmatpush2.msra.mxu0 0.0
    %584 = vmatprep.subr.mxu0 0.0
    %585 = vmatpush2.msra.mxu0 0.0
    %586 = vmatprep.subr.mxu0 0.0
    %587 = vmatpush2.msra.mxu0 0.0
    %588 = vmatprep.subr.mxu0 0.0
    %589 = vmatpush2.msra.mxu0 0.0
    %590 = vmatprep.subr.mxu0 0.0
    %591 = vmatpush2.msra.mxu0 0.0
    %592 = vmatprep.subr.mxu0 0.0
    %593 = vmatpush2.msra.mxu0 0.0
    %594 = vmatprep.subr.mxu0 0.0
    %595 = vmatpush2.msra.mxu0 0.0
    %596 = vmatprep.subr.mxu0 0.0
    %597 = vmatpush2.msra.mxu0 0.0
    %598 = vmatprep.subr.mxu0 0.0
    %599 = vmatpush2.msra.mxu0 0.0
    %600 = vmatprep.subr.mxu0 0.0
    %601 = vmatpush2.msra.mxu0 0.0
    %602 = vmatprep.subr.mxu0 0.0
    %603 = vmatpush2.msra.mxu0 0.0
    %604 = vmatprep.subr.mxu0 0.0
    %605 = vmatpush2.msra.mxu0 0.0
    %606 = vmatprep.mubr.f32.mxu0 0.0
    %607 = vmatmul.mubr.f32.gmra.mxu0 %v474
    %v608 = vpop.f32.mrf.mxu0
    %v609 = vadd.f32 %v530, %v608
    %v610 = vpop.f32.mrf.mxu0
    %v611 = vadd.f32 %v534, %v610
    %612 = vdwg.mxu0
    %613 = vmatprep.subr.mxu0 0.0
    %614 = vmatpush1.msra.mxu0 %v524
    %615 = vmatprep.subr.mxu0 0.0
    %616 = vmatpush1.msra.mxu0 %v521
    %617 = vmatprep.subr.mxu0 0.0
    %618 = vmatpush1.msra.mxu0 %v518
    %619 = vmatprep.subr.mxu0 0.0
    %620 = vmatpush1.msra.mxu0 %v515
    %621 = vmatprep.subr.mxu0 0.0
    %622 = vmatpush1.msra.mxu0 %v512
    %623 = vmatprep.subr.mxu0 0.0
    %624 = vmatpush1.msra.mxu0 %v509
    %625 = vmatprep.subr.mxu0 0.0
    %626 = vmatpush1.msra.mxu0 %v506
    %627 = vmatprep.subr.mxu0 0.0
    %628 = vmatpush1.msra.mxu0 %v503
    %629 = vmatprep.subr.mxu0 0.0
    %630 = vmatpush1.msra.mxu0 %v500
    %631 = vmatprep.subr.mxu0 0.0
    %632 = vmatpush1.msra.mxu0 %v497
    %633 = vmatprep.subr.mxu0 0.0
    %634 = vmatpush1.msra.mxu0 %v494
    %635 = vmatprep.subr.mxu0 0.0
    %636 = vmatpush1.msra.mxu0 %v491
    %637 = vmatprep.subr.mxu0 0.0
    %638 = vmatpush1.msra.mxu0 %v488
    %639 = vmatprep.subr.mxu0 0.0
    %640 = vmatpush1.msra.mxu0 %v485
    %641 = vmatprep.subr.mxu0 0.0
    %642 = vmatpush1.msra.mxu0 %v482
    %643 = vmatprep.subr.mxu0 0.0
    %644 = vmatpush1.msra.mxu0 %v479
    %645 = vmatprep.subr.mxu0 0.0
    %646 = vmatpush2.msra.mxu0 0.0
    %647 = vmatprep.subr.mxu0 0.0
    %648 = vmatpush2.msra.mxu0 0.0
    %649 = vmatprep.subr.mxu0 0.0
    %650 = vmatpush2.msra.mxu0 0.0
    %651 = vmatprep.subr.mxu0 0.0
    %652 = vmatpush2.msra.mxu0 0.0
    %653 = vmatprep.subr.mxu0 0.0
    %654 = vmatpush2.msra.mxu0 0.0
    %655 = vmatprep.subr.mxu0 0.0
    %656 = vmatpush2.msra.mxu0 0.0
    %657 = vmatprep.subr.mxu0 0.0
    %658 = vmatpush2.msra.mxu0 0.0
    %659 = vmatprep.subr.mxu0 0.0
    %660 = vmatpush2.msra.mxu0 0.0
    %661 = vmatprep.subr.mxu0 0.0
    %662 = vmatpush2.msra.mxu0 0.0
    %663 = vmatprep.subr.mxu0 0.0
    %664 = vmatpush2.msra.mxu0 0.0
    %665 = vmatprep.subr.mxu0 0.0
    %666 = vmatpush2.msra.mxu0 0.0
    %667 = vmatprep.subr.mxu0 0.0
    %668 = vmatpush2.msra.mxu0 0.0
    %669 = vmatprep.subr.mxu0 0.0
    %670 = vmatpush2.msra.mxu0 0.0
    %671 = vmatprep.subr.mxu0 0.0
    %672 = vmatpush2.msra.mxu0 0.0
    %673 = vmatprep.subr.mxu0 0.0
    %674 = vmatpush2.msra.mxu0 0.0
    %675 = vmatprep.subr.mxu0 0.0
    %676 = vmatpush2.msra.mxu0 0.0
    %677 = vmatprep.mubr.f32.mxu0 0.0
    %678 = vmatmul.mubr.f32.gmra.mxu0 %v474
    %v679 = vpop.f32.mrf.mxu0
    %v680 = vadd.f32 %v538, %v679
    %v681 = vpop.f32.mrf.mxu0
    %682 = vdwg.mxu0
    %683 = vmatprep.subr.mxu0 0.0
    %684 = vmatpush1.xpose.msra.mxu0 0.0
    %685 = vmatprep.subr.mxu0 0.0
    %686 = vmatpush1.xpose.msra.mxu0 0.0
    %687 = vmatprep.subr.mxu0 0.0
    %688 = vmatpush1.xpose.msra.mxu0 0.0
    %689 = vmatprep.subr.mxu0 0.0
    %690 = vmatpush1.xpose.msra.mxu0 0.0
    %691 = vmatprep.subr.mxu0 0.0
    %692 = vmatpush1.xpose.msra.mxu0 0.0
    %693 = vmatprep.subr.mxu0 0.0
    %694 = vmatpush1.xpose.msra.mxu0 0.0
    %695 = vmatprep.subr.mxu0 0.0
    %696 = vmatpush1.xpose.msra.mxu0 0.0
    %697 = vmatprep.subr.mxu0 0.0
    %698 = vmatpush1.xpose.msra.mxu0 0.0
    %699 = vmatprep.subr.mxu0 0.0
    %700 = vmatpush1.xpose.msra.mxu0 0.0
    %701 = vmatprep.subr.mxu0 0.0
    %702 = vmatpush1.xpose.msra.mxu0 0.0
    %703 = vmatprep.subr.mxu0 0.0
    %704 = vmatpush1.xpose.msra.mxu0 0.0
    %705 = vmatprep.subr.mxu0 0.0
    %706 = vmatpush1.xpose.msra.mxu0 0.0
    %707 = vmatprep.subr.mxu0 0.0
    %708 = vmatpush1.xpose.msra.mxu0 0.0
    %709 = vmatprep.subr.mxu0 0.0
    %710 = vmatpush1.xpose.msra.mxu0 0.0
    %711 = vmatprep.subr.mxu0 0.0
    %712 = vmatpush1.xpose.msra.mxu0 0.0
    %713 = vmatprep.subr.mxu0 0.0
    %714 = vmatpush1.xpose.msra.mxu0 %v611
    %715 = vmatprep.subr.mxu0 0.0
    %716 = vmatpush2.xpose.msra.mxu0 0.0
    %717 = vmatprep.subr.mxu0 0.0
    %718 = vmatpush2.xpose.msra.mxu0 0.0
    %719 = vmatprep.subr.mxu0 0.0
    %720 = vmatpush2.xpose.msra.mxu0 0.0
    %721 = vmatprep.subr.mxu0 0.0
    %722 = vmatpush2.xpose.msra.mxu0 0.0
    %723 = vmatprep.subr.mxu0 0.0
    %724 = vmatpush2.xpose.msra.mxu0 0.0
    %725 = vmatprep.subr.mxu0 0.0
    %726 = vmatpush2.xpose.msra.mxu0 0.0
    %727 = vmatprep.subr.mxu0 0.0
    %728 = vmatpush2.xpose.msra.mxu0 0.0
    %729 = vmatprep.subr.mxu0 0.0
    %730 = vmatpush2.xpose.msra.mxu0 0.0
    %731 = vmatprep.subr.mxu0 0.0
    %732 = vmatpush2.xpose.msra.mxu0 0.0
    %733 = vmatprep.subr.mxu0 0.0
    %734 = vmatpush2.xpose.msra.mxu0 0.0
    %735 = vmatprep.subr.mxu0 0.0
    %736 = vmatpush2.xpose.msra.mxu0 0.0
    %737 = vmatprep.subr.mxu0 0.0
    %738 = vmatpush2.xpose.msra.mxu0 0.0
    %739 = vmatprep.subr.mxu0 0.0
    %740 = vmatpush2.xpose.msra.mxu0 0.0
    %741 = vmatprep.subr.mxu0 0.0
    %742 = vmatpush2.xpose.msra.mxu0 0.0
    %743 = vmatprep.subr.mxu0 0.0
    %744 = vmatpush2.xpose.msra.mxu0 0.0
    %745 = vmatprep.subr.mxu0 0.0
    %746 = vmatpush2.xpose.msra.mxu0 0.0
    %747 = vmatprep.mubr.f32.mxu0 0.0
    %748 = vmatmul.mubr.f32.gmra.mxu0 %v609
    %v749 = vpop.f32.mrf.mxu0
    %v750 = vadd.f32 0.0, %v749
    %v751 = vpop.f32.mrf.mxu0
    %752 = vdwg.mxu0
    %v753 = vsel %vm385, %v750, -inf
    %754 = vmax.xlane.f32.xlu0 %v753
    %v755 = vpop.xlane.xlu0 %754
    %v756 = vsub.f32 %v750, %v755
    %v757 = vmul.f32 %v756, 1.442695
    %v758 = vpow.pop %v757
    %v759 = vsel %vm385, %v758, 0.0
    %760 = vadd.xlane.f32.xlu0 %v759
    %v761 = vpop.xlane.xlu0 %760
    %v762 = vrcp.pop %v761
    %v763 = vmul.f32 %v758, %v762
    %v765 = vsel %vm385, %v763, 0
    %767 = vmatprep.subr.mxu0 0.0
    %768 = vmatpush1.msra.mxu0 0.0
    %769 = vmatprep.subr.mxu0 0.0
    %770 = vmatpush1.msra.mxu0 0.0
    %771 = vmatprep.subr.mxu0 0.0
    %772 = vmatpush1.msra.mxu0 0.0
    %773 = vmatprep.subr.mxu0 0.0
    %774 = vmatpush1.msra.mxu0 0.0
    %775 = vmatprep.subr.mxu0 0.0
    %776 = vmatpush1.msra.mxu0 0.0
    %777 = vmatprep.subr.mxu0 0.0
    %778 = vmatpush1.msra.mxu0 0.0
    %779 = vmatprep.subr.mxu0 0.0
    %780 = vmatpush1.msra.mxu0 0.0
    %781 = vmatprep.subr.mxu0 0.0
    %782 = vmatpush1.msra.mxu0 0.0
    %783 = vmatprep.subr.mxu0 0.0
    %784 = vmatpush1.msra.mxu0 0.0
    %785 = vmatprep.subr.mxu0 0.0
    %786 = vmatpush1.msra.mxu0 0.0
    %787 = vmatprep.subr.mxu0 0.0
    %788 = vmatpush1.msra.mxu0 0.0
    %789 = vmatprep.subr.mxu0 0.0
    %790 = vmatpush1.msra.mxu0 0.0
    %791 = vmatprep.subr.mxu0 0.0
    %792 = vmatpush1.msra.mxu0 0.0
    %793 = vmatprep.subr.mxu0 0.0
    %794 = vmatpush1.msra.mxu0 0.0
    %795 = vmatprep.subr.mxu0 0.0
    %796 = vmatpush1.msra.mxu0 0.0
    %797 = vmatprep.subr.mxu0 0.0
    %798 = vmatpush1.msra.mxu0 %v680
    %799 = vmatprep.subr.mxu0 0.0
    %800 = vmatpush2.msra.mxu0 0.0
    %801 = vmatprep.subr.mxu0 0.0
    %802 = vmatpush2.msra.mxu0 0.0
    %803 = vmatprep.subr.mxu0 0.0
    %804 = vmatpush2.msra.mxu0 0.0
    %805 = vmatprep.subr.mxu0 0.0
    %806 = vmatpush2.msra.mxu0 0.0
    %807 = vmatprep.subr.mxu0 0.0
    %808 = vmatpush2.msra.mxu0 0.0
    %809 = vmatprep.subr.mxu0 0.0
    %810 = vmatpush2.msra.mxu0 0.0
    %811 = vmatprep.subr.mxu0 0.0
    %812 = vmatpush2.msra.mxu0 0.0
    %813 = vmatprep.subr.mxu0 0.0
    %814 = vmatpush2.msra.mxu0 0.0
    %815 = vmatprep.subr.mxu0 0.0
    %816 = vmatpush2.msra.mxu0 0.0
    %817 = vmatprep.subr.mxu0 0.0
    %818 = vmatpush2.msra.mxu0 0.0
    %819 = vmatprep.subr.mxu0 0.0
    %820 = vmatpush2.msra.mxu0 0.0
    %821 = vmatprep.subr.mxu0 0.0
    %822 = vmatpush2.msra.mxu0 0.0
    %823 = vmatprep.subr.mxu0 0.0
    %824 = vmatpush2.msra.mxu0 0.0
    %825 = vmatprep.subr.mxu0 0.0
    %826 = vmatpush2.msra.mxu0 0.0
    %827 = vmatprep.subr.mxu0 0.0
    %828 = vmatpush2.msra.mxu0 0.0
    %829 = vmatprep.subr.mxu0 0.0
    %830 = vmatpush2.msra.mxu0 0.0
    %831 = vmatprep.mubr.f32.mxu0 0.0
    %832 = vmatmul.mubr.f32.gmra.mxu0 %v765
    %v833 = vpop.f32.mrf.mxu0
    %v834 = vadd.f32 0.0, %v833
    %v835 = vpop.f32.mrf.mxu0
    %836 = vdwg.mxu0
    %v837 = vmax.f32 %v834, 0.0
    %v838 = vld [vmem:[%s10] sm:$0xff]
    %v839 = vld [vmem:[%s10 + $0x8] sm:$0xff]
    %v840 = vld [vmem:[%s10 + $0x10] sm:$0xff]
    %v841 = vld [vmem:[%s10 + $0x18] sm:$0xff]
    %v842 = vld [vmem:[%s10 + $0x20] sm:$0xff]
    %v843 = vld [vmem:[%s10 + $0x28] sm:$0xff]
    %v844 = vld [vmem:[%s10 + $0x30] sm:$0xff]
    %v845 = vld [vmem:[%s10 + $0x38] sm:$0xff]
    %v846 = vld [vmem:[%s10 + $0x40] sm:$0xff]
    %v847 = vld [vmem:[%s10 + $0x48] sm:$0xff]
    %v848 = vld [vmem:[%s10 + $0x50] sm:$0xff]
    %v849 = vld [vmem:[%s10 + $0x58] sm:$0xff]
    %v850 = vld [vmem:[%s10 + $0x60] sm:$0xff]
    %v851 = vld [vmem:[%s10 + $0x68] sm:$0xff]
    %v852 = vld [vmem:[%s10 + $0x70] sm:$0xff]
    %v853 = vld [vmem:[%s10 + $0x78] sm:$0xff]
    %v854 = vld [vmem:[%s11] sm:$0x1]
    %v856 = vlaneseq
    %v857 = vshrl.u32 %v856, 7
    %v858 = vsub.s32 0, %v857
    %v859 = vrot.slane %v854, %v858
    %861 = vmatprep.subr.mxu0 0.0
    %862 = vmatpush1.msra.mxu0 %v853
    %863 = vmatprep.subr.mxu0 0.0
    %864 = vmatpush1.msra.mxu0 %v852
    %865 = vmatprep.subr.mxu0 0.0
    %866 = vmatpush1.msra.mxu0 %v851
    %867 = vmatprep.subr.mxu0 0.0
    %868 = vmatpush1.msra.mxu0 %v850
    %869 = vmatprep.subr.mxu0 0.0
    %870 = vmatpush1.msra.mxu0 %v849
    %871 = vmatprep.subr.mxu0 0.0
    %872 = vmatpush1.msra.mxu0 %v848
    %873 = vmatprep.subr.mxu0 0.0
    %874 = vmatpush1.msra.mxu0 %v847
    %875 = vmatprep.subr.mxu0 0.0
    %876 = vmatpush1.msra.mxu0 %v846
    %877 = vmatprep.subr.mxu0 0.0
    %878 = vmatpush1.msra.mxu0 %v845
    %879 = vmatprep.subr.mxu0 0.0
    %880 = vmatpush1.msra.mxu0 %v844
    %881 = vmatprep.subr.mxu0 0.0
    %882 = vmatpush1.msra.mxu0 %v843
    %883 = vmatprep.subr.mxu0 0.0
    %884 = vmatpush1.msra.mxu0 %v842
    %885 = vmatprep.subr.mxu0 0.0
    %886 = vmatpush1.msra.mxu0 %v841
    %887 = vmatprep.subr.mxu0 0.0
    %888 = vmatpush1.msra.mxu0 %v840
    %889 = vmatprep.subr.mxu0 0.0
    %890 = vmatpush1.msra.mxu0 %v839
    %891 = vmatprep.subr.mxu0 0.0
    %892 = vmatpush1.msra.mxu0 %v838
    %893 = vmatprep.subr.mxu0 0.0
    %894 = vmatpush2.msra.mxu0 0.0
    %895 = vmatprep.subr.mxu0 0.0
    %896 = vmatpush2.msra.mxu0 0.0
    %897 = vmatprep.subr.mxu0 0.0
    %898 = vmatpush2.msra.mxu0 0.0
    %899 = vmatprep.subr.mxu0 0.0
    %900 = vmatpush2.msra.mxu0 0.0
    %901 = vmatprep.subr.mxu0 0.0
    %902 = vmatpush2.msra.mxu0 0.0
    %903 = vmatprep.subr.mxu0 0.0
    %904 = vmatpush2.msra.mxu0 0.0
    %905 = vmatprep.subr.mxu0 0.0
    %906 = vmatpush2.msra.mxu0 0.0
    %907 = vmatprep.subr.mxu0 0.0
    %908 = vmatpush2.msra.mxu0 0.0
    %909 = vmatprep.subr.mxu0 0.0
    %910 = vmatpush2.msra.mxu0 0.0
    %911 = vmatprep.subr.mxu0 0.0
    %912 = vmatpush2.msra.mxu0 0.0
    %913 = vmatprep.subr.mxu0 0.0
    %914 = vmatpush2.msra.mxu0 0.0
    %915 = vmatprep.subr.mxu0 0.0
    %916 = vmatpush2.msra.mxu0 0.0
    %917 = vmatprep.subr.mxu0 0.0
    %918 = vmatpush2.msra.mxu0 0.0
    %919 = vmatprep.subr.mxu0 0.0
    %920 = vmatpush2.msra.mxu0 0.0
    %921 = vmatprep.subr.mxu0 0.0
    %922 = vmatpush2.msra.mxu0 0.0
    %923 = vmatprep.subr.mxu0 0.0
    %924 = vmatpush2.msra.mxu0 0.0
    %925 = vmatprep.mubr.f32.mxu0 0.0
    %926 = vmatmul.mubr.f32.gmra.mxu0 %v837
    %v927 = vpop.f32.mrf.mxu0
    %v928 = vadd.f32 %v859, %v927
    %v929 = vpop.f32.mrf.mxu0
    %930 = vdwg.mxu0
    %v931 = vmax.f32 %v928, 0.0
    %v932 = vld [vmem:[%s12] sm:$0xff]
    %v933 = vld [vmem:[%s12 + $0x8] sm:$0xff]
    %v934 = vld [vmem:[%s12 + $0x10] sm:$0xff]
    %v935 = vld [vmem:[%s12 + $0x18] sm:$0xff]
    %v936 = vld [vmem:[%s12 + $0x20] sm:$0xff]
    %v937 = vld [vmem:[%s12 + $0x28] sm:$0xff]
    %v938 = vld [vmem:[%s12 + $0x30] sm:$0xff]
    %v939 = vld [vmem:[%s12 + $0x38] sm:$0xff]
    %v940 = vld [vmem:[%s13] sm:$0x1]
    %v942 = vlaneseq
    %v943 = vshrl.u32 %v942, 7
    %v944 = vsub.s32 0, %v943
    %v945 = vrot.slane %v940, %v944
    %vm947 = vcmask 523264
    %v949 = vsel %vm947, %v931, 0
    %951 = vmatprep.subr.mxu0 0.0
    %952 = vmatpush1.msra.mxu0 0.0
    %953 = vmatprep.subr.mxu0 0.0
    %954 = vmatpush1.msra.mxu0 0.0
    %955 = vmatprep.subr.mxu0 0.0
    %956 = vmatpush1.msra.mxu0 0.0
    %957 = vmatprep.subr.mxu0 0.0
    %958 = vmatpush1.msra.mxu0 0.0
    %959 = vmatprep.subr.mxu0 0.0
    %960 = vmatpush1.msra.mxu0 0.0
    %961 = vmatprep.subr.mxu0 0.0
    %962 = vmatpush1.msra.mxu0 0.0
    %963 = vmatprep.subr.mxu0 0.0
    %964 = vmatpush1.msra.mxu0 0.0
    %965 = vmatprep.subr.mxu0 0.0
    %966 = vmatpush1.msra.mxu0 0.0
    %967 = vmatprep.subr.mxu0 0.0
    %968 = vmatpush1.msra.mxu0 %v939
    %969 = vmatprep.subr.mxu0 0.0
    %970 = vmatpush1.msra.mxu0 %v938
    %971 = vmatprep.subr.mxu0 0.0
    %972 = vmatpush1.msra.mxu0 %v937
    %973 = vmatprep.subr.mxu0 0.0
    %974 = vmatpush1.msra.mxu0 %v936
    %975 = vmatprep.subr.mxu0 0.0
    %976 = vmatpush1.msra.mxu0 %v935
    %977 = vmatprep.subr.mxu0 0.0
    %978 = vmatpush1.msra.mxu0 %v934
    %979 = vmatprep.subr.mxu0 0.0
    %980 = vmatpush1.msra.mxu0 %v933
    %981 = vmatprep.subr.mxu0 0.0
    %982 = vmatpush1.msra.mxu0 %v932
    %983 = vmatprep.subr.mxu0 0.0
    %984 = vmatpush2.msra.mxu0 0.0
    %985 = vmatprep.subr.mxu0 0.0
    %986 = vmatpush2.msra.mxu0 0.0
    %987 = vmatprep.subr.mxu0 0.0
    %988 = vmatpush2.msra.mxu0 0.0
    %989 = vmatprep.subr.mxu0 0.0
    %990 = vmatpush2.msra.mxu0 0.0
    %991 = vmatprep.subr.mxu0 0.0
    %992 = vmatpush2.msra.mxu0 0.0
    %993 = vmatprep.subr.mxu0 0.0
    %994 = vmatpush2.msra.mxu0 0.0
    %995 = vmatprep.subr.mxu0 0.0
    %996 = vmatpush2.msra.mxu0 0.0
    %997 = vmatprep.subr.mxu0 0.0
    %998 = vmatpush2.msra.mxu0 0.0
    %999 = vmatprep.subr.mxu0 0.0
    %1000 = vmatpush2.msra.mxu0 0.0
    %1001 = vmatprep.subr.mxu0 0.0
    %1002 = vmatpush2.msra.mxu0 0.0
    %1003 = vmatprep.subr.mxu0 0.0
    %1004 = vmatpush2.msra.mxu0 0.0
    %1005 = vmatprep.subr.mxu0 0.0
    %1006 = vmatpush2.msra.mxu0 0.0
    %1007 = vmatprep.subr.mxu0 0.0
    %1008 = vmatpush2.msra.mxu0 0.0
    %1009 = vmatprep.subr.mxu0 0.0
    %1010 = vmatpush2.msra.mxu0 0.0
    %1011 = vmatprep.subr.mxu0 0.0
    %1012 = vmatpush2.msra.mxu0 0.0
    %1013 = vmatprep.subr.mxu0 0.0
    %1014 = vmatpush2.msra.mxu0 0.0
    %1015 = vmatprep.mubr.f32.mxu0 0.0
    %1016 = vmatmul.mubr.f32.gmra.mxu0 %v949
    %v1017 = vpop.f32.mrf.mxu0
    %v1018 = vadd.f32 %v945, %v1017
    %v1019 = vpop.f32.mrf.mxu0
    %1020 = vdwg.mxu0
    %vm1021 = vcmask 31744
    %v1022 = vsel %vm1021, %v1018, -inf
    %1023 = vmax.xlane.f32.xlu0 %v1022
    %v1024 = vpop.xlane.xlu0 %1023
    %v1025 = vsub.f32 %v1018, %v1024
    %v1026 = vmul.f32 %v1025, 1.442695
    %v1027 = vpow.pop %v1026
    %v1028 = vsel %vm1021, %v1027, 0.0
    %1029 = vadd.xlane.f32.xlu0 %v1028
    %v1030 = vpop.xlane.xlu0 %1029
    %v1031 = vrcp.pop %v1030
    %v1032 = vmul.f32 %v1027, %v1031
    %1033 = vst.msk [vmem:[%s14] sm:$0xff] %vm1021, %v1032
    // Predicated region
    $region62: #{actor_forward.1} parent=1 // pred_check
      _
    $region63: #{actor_forward.1} parent=1 // pred_check_branch
      %1035 = sbr.rel (0) target = $region65
    $region64: #{actor_forward.1} parent=1 // pred_region
      _
    $region65: #{actor_forward.1} parent=1 // pred_fallthru
      _
    // Predicated region
    $region66: #{actor_forward.1} parent=1 // pred_check
      _
    $region67: #{actor_forward.1} parent=1 // pred_check_branch
      %1037 = sbr.rel (0) target = $region69
    $region68: #{actor_forward.1} parent=1 // pred_region
      _
    $region69: #{actor_forward.1} parent=1 // pred_fallthru
      _
    %1038 = vsyncpa [#allocation3], 1

</llo_original>
